<compile_context>
chip_gen: v5e
topology: v5e:2x2
jax: 0.10.0
libtpu: 0.0.40
codegen_flags: <defaults>
</compile_context>

<pallas_src>
import functools

import jax
import jax.numpy as jnp
from jax.experimental import pallas as pl
from jax.experimental.pallas import tpu as pltpu

_LANE = 128      # lane width (last dim)
_SUBLANE = 8     # f32 sublane packing (second-to-last dim)


def _round_up(x: int, m: int) -> int:
    return ((x + m - 1) // m) * m


def _cdiv(a: int, b: int) -> int:
    return -(-a // b)


def _tpu_info():
    try:
        return pltpu.get_tpu_info()
    except Exception:
        return None


@functools.lru_cache(maxsize=1)
def _vmem_limit_bytes() -> int:
    """Generation-aware scoped-VMEM limit (~75% of physical, capped at 96 MiB)."""
    cap = None
    info = _tpu_info()
    if info is not None:
        cap = getattr(info, "vmem_capacity_bytes", None)
    if not cap:
        try:
            kind = jax.devices()[0].device_kind.lower()
            cap = (64 << 20) if "7" in kind else (128 << 20)   # v7x: 64 MiB/TC
        except Exception:
            cap = 64 << 20                                      # safe default
    return int(min(int(cap) * 3 // 4, 96 << 20))


@functools.lru_cache(maxsize=1)
def _num_tensorcores() -> int:
    """TensorCores per chip (2 on v7x, 1 on v5e/v6e). Conservative default 1."""
    info = _tpu_info()
    if info is not None:
        for attr in ("num_cores", "core_count", "num_tensorcores", "tensorcore_count"):
            v = getattr(info, attr, None)
            try:
                if v is not None and int(v) > 0:
                    return int(v)
            except (TypeError, ValueError):
                pass
    try:
        if "7" in jax.devices()[0].device_kind.lower():
            return 2
    except Exception:
        pass
    return 1


@functools.lru_cache(maxsize=1)
def _buffered_one_supported() -> bool:
    """One-time, cached probe: does this Pallas accept pipeline_mode=Buffered(1)
    on a grid-invariant input?  Probe compiles a tiny kernel; the real kernel is
    then built once with no try/except around execution."""
    try:
        def _k(x_ref, w_ref, o_ref):
            o_ref[...] = x_ref[...] + w_ref[...]

        fn = pl.pallas_call(
            _k,
            out_shape=jax.ShapeDtypeStruct((16, 128), jnp.float32),
            grid_spec=pltpu.PrefetchScalarGridSpec(
                num_scalar_prefetch=0,
                grid=(2,),
                in_specs=[pl.BlockSpec((8, 128), lambda i: (i, 0)),
                          pl.BlockSpec((8, 128), lambda i: (0, 0),
                                       pipeline_mode=pl.Buffered(1))],
                out_specs=pl.BlockSpec((8, 128), lambda i: (i, 0)),
            ),
        )
        jax.jit(fn).lower(jnp.zeros((16, 128), jnp.float32),
                          jnp.zeros((8, 128), jnp.float32)).compile()
        return True
    except Exception:
        return False


def _fused_mlp_kernel(*refs, relu_flags):
    """refs = (x_ref, w0, b0, w1, b1, ..., o_ref). One batch tile, all layers.

    Intermediate activations stay in vregs/VMEM; nothing intermediate touches HBM.
    """
    x_ref = refs[0]
    o_ref = refs[-1]
    h = x_ref[...].astype(jnp.float32)
    for i, relu in enumerate(relu_flags):
        w = refs[1 + 2 * i][...]
        b = refs[2 + 2 * i][...].astype(jnp.float32)   # [1, d_out] broadcasts over rows
        h = jnp.dot(h.astype(w.dtype), w, preferred_element_type=jnp.float32) + b
        if relu:
            h = jnp.maximum(h, 0.0)
    o_ref[...] = h.astype(o_ref.dtype)


def fused_mlp_forward(x: jax.Array, padded_params, relu_flags, out_dim: int) -> jax.Array:
    """Run the whole MLP in a single Pallas kernel.

    x: [B, D_in] float32 (fed at true feature width; only batch is padded).
    padded_params: list of (W [k, n], b [1, n]); first layer unpadded in K,
                   last layer unpadded in N, hidden dims lane(128)-padded.
    """
    B, D_in = x.shape
    dims = [(int(w.shape[0]), int(w.shape[1])) for (w, _) in padded_params]
    assert dims[0][0] == D_in, "first weight must be unpadded in K (= D_in)"
    D_out = dims[-1][1]
    assert D_out == out_dim, "last weight must be unpadded in N (= out_dim)"

    weight_bytes = sum(w.size * w.dtype.itemsize + b.size * b.dtype.itemsize
                       for (w, b) in padded_params)
    max_feat = max(max(d) for d in dims)

    # ---- generation-aware VMEM budget & batch-tile selection ----------------
    vmem_limit = _vmem_limit_bytes()
    # Reserve for weights (worst case double-buffered) plus a safety margin.
    avail = vmem_limit - 2 * weight_bytes - (4 << 20)
    # Per-row activation bytes: double-buffered input + output tiles plus one
    # intermediate's worth of headroom for the in-kernel chain (all f32).
    bytes_per_row = 4 * (2 * D_in + 2 * D_out + 2 * max_feat)
    if avail > bytes_per_row * _SUBLANE:
        tm_max = min(4096, (avail // bytes_per_row // _SUBLANE) * _SUBLANE)
    else:
        tm_max = _SUBLANE
    tm_max = max(_SUBLANE, tm_max)

    # Split into >=2 grid steps only when the chip actually has >=2 TensorCores
    # (v7x); on single-TC chips the grid is a serial loop and a split only adds
    # per-step overhead.
    min_tiles = 2 if (_num_tensorcores() >= 2 and B >= 2 * _SUBLANE) else 1
    n_tiles = max(min_tiles, _cdiv(B, tm_max))
    tm = _round_up(_cdiv(B, n_tiles), _SUBLANE)       # bounds pad waste to ~8 rows/tile
    B_pad = n_tiles * tm

    # Pad only the batch dimension (exact: extra rows are independent, sliced off).
    x_in = x if B_pad == B else jnp.pad(x, ((0, B_pad - B), (0, 0)))

    flat_params = []
    for (w, b) in padded_params:
        flat_params += [w, b]

    kernel = functools.partial(_fused_mlp_kernel, relu_flags=tuple(relu_flags))

    # Full-last-dim blocks are legal even when D_in / D_out aren't multiples of 128.
    x_spec = pl.BlockSpec((tm, D_in), lambda i: (i, 0))
    out_spec = pl.BlockSpec((tm, D_out), lambda i: (i, 0))

    single_buffer = _buffered_one_supported()

    def wb_specs():
        kw = dict(pipeline_mode=pl.Buffered(1)) if single_buffer else {}
        specs = []
        for (k, n) in dims:
            specs.append(pl.BlockSpec((k, n), lambda i: (0, 0), **kw))
            specs.append(pl.BlockSpec((1, n), lambda i: (0, 0), **kw))
        return specs

    flops = sum(2 * B_pad * k * n for (k, n) in dims)
    bytes_accessed = x_in.size * x_in.dtype.itemsize + B_pad * D_out * 4 + weight_bytes
    cost = pl.CostEstimate(flops=flops, transcendentals=0, bytes_accessed=bytes_accessed)

    # TODO(synk): for very large D_in x D_out layers the full-weight-resident
    # design stops scaling; a K/N grid with an f32 VMEM accumulator would be
    # needed there (not required at these shapes).
    out_pad = pl.pallas_call(
        kernel,
        out_shape=jax.ShapeDtypeStruct((B_pad, D_out), x.dtype),
        grid_spec=pltpu.PrefetchScalarGridSpec(
            num_scalar_prefetch=0,
            grid=(n_tiles,),
            in_specs=[x_spec] + wb_specs(),
            out_specs=out_spec,
        ),
        compiler_params=pltpu.CompilerParams(
            dimension_semantics=("parallel",),
            vmem_limit_bytes=vmem_limit,
        ),
        cost_estimate=cost,
    )(x_in, *flat_params)

    return out_pad if B_pad == B else out_pad[:B]


class MLPPallas:
    """JAX/Pallas equivalent of the PyTorch MLP module (whole MLP fused)."""

    def __init__(self, input_dimension: int, output_dimension: int,
                 hidden_dimension: int, num_nonlinear_layers: int, key,
                 use_bf16: bool = False):
        self.input_dimension = input_dimension
        self.output_dimension = output_dimension

        if num_nonlinear_layers == 0:
            layer_defs = [(input_dimension, output_dimension, False)]
        else:
            layer_defs = [(input_dimension, hidden_dimension, True)]
            for _ in range(num_nonlinear_layers - 1):
                layer_defs.append((hidden_dimension, hidden_dimension, True))
            layer_defs.append((hidden_dimension, output_dimension, False))

        n_layers = len(layer_defs)
        w_dtype = jnp.bfloat16 if use_bf16 else jnp.float32

        self.params = []         # raw (W, b, relu) for reference math
        self.padded_params = []  # (W_p, b_p[1, n_p]); hidden dims lane-padded only
        self.relu_flags = []
        for idx, (d_in, d_out, relu) in enumerate(layer_defs):
            key, kw, kb = jax.random.split(key, 3)
            # deterministic init mirroring nn.Linear's U(-1/sqrt(fan_in), +1/sqrt(fan_in))
            bound = 1.0 / (d_in ** 0.5)
            W = jax.random.uniform(kw, (d_in, d_out), jnp.float32, -bound, bound)
            b = jax.random.uniform(kb, (d_out,), jnp.float32, -bound, bound)

            # First layer: K stays at the true input width (x is fed unpadded).
            # Last layer: N stays at the true output width (output stored unpadded).
            # Hidden dims padded to 128 lanes; zero padding is mathematically exact.
            # NOTE: on v6e/v7x, production hidden sizes that are multiples of 256
            # fully fill the 256-wide MXU; irrelevant at these demo dims.
            k_pad = d_in if idx == 0 else _round_up(d_in, _LANE)
            n_pad = d_out if idx == n_layers - 1 else _round_up(d_out, _LANE)
            W_p = jnp.zeros((k_pad, n_pad), w_dtype).at[:d_in, :d_out].set(W.astype(w_dtype))
            b_p = jnp.zeros((1, n_pad), jnp.float32).at[0, :d_out].set(b)

            self.params.append((W, b, relu))
            self.padded_params.append((W_p, b_p))
            self.relu_flags.append(relu)

    def __call__(self, x: jax.Array) -> jax.Array:
        return fused_mlp_forward(x, self.padded_params, self.relu_flags,
                                 self.output_dimension)


if __name__ == "__main__":
    key = jax.random.PRNGKey(0)
    key, k_in, k_model = jax.random.split(key, 3)

    batch = 8
    input_dim = 16
    hidden_dim = 32
    output_dim = 4
    num_nonlinear_layers = 2

    x = jax.random.normal(k_in, (batch, input_dim), dtype=jnp.float32)

    model = MLPPallas(input_dim, output_dim, hidden_dim, num_nonlinear_layers, k_model)
    out = jax.block_until_ready(model(x))

    # reference check in plain JAX (unpadded weights)
    ref = x
    for (W, b, relu) in model.params:
        ref = ref @ W + b
        if relu:
            ref = jnp.maximum(ref, 0.0)

    assert out.shape == (batch, output_dim)
    assert jnp.allclose(out, ref, atol=1e-5, rtol=1e-5)

    print("KERNEL_OK")
</pallas_src>

<mosaic_0001>
module attributes {stable_mosaic.version = 11 : i64} {
  func.func @_fused_mlp_kernel(%arg0: i32, %arg1: memref<8x16xf32, #tpu.memory_space<vmem>>, %arg2: memref<16x128xf32, #tpu.memory_space<vmem>>, %arg3: memref<1x128xf32, #tpu.memory_space<vmem>>, %arg4: memref<128x128xf32, #tpu.memory_space<vmem>>, %arg5: memref<1x128xf32, #tpu.memory_space<vmem>>, %arg6: memref<128x4xf32, #tpu.memory_space<vmem>>, %arg7: memref<1x4xf32, #tpu.memory_space<vmem>>, %arg8: memref<8x4xf32, #tpu.memory_space<vmem>>) attributes {dimension_semantics = [#tpu.dimension_semantics<parallel>], iteration_bounds = array<i64: 1>, scalar_prefetch = 0 : i64, scratch_operands = 0 : i64, tpu.core_type = #tpu.core_type<tc>, window_params = [{transform_indices = @transform_0, window_bounds = array<i64: 8, 16>}, {pipeline_mode = #tpu.pipeline_mode<synchronous>, transform_indices = @transform_1, window_bounds = array<i64: 16, 128>}, {pipeline_mode = #tpu.pipeline_mode<synchronous>, transform_indices = @transform_2, window_bounds = array<i64: 1, 128>}, {pipeline_mode = #tpu.pipeline_mode<synchronous>, transform_indices = @transform_3, window_bounds = array<i64: 128, 128>}, {pipeline_mode = #tpu.pipeline_mode<synchronous>, transform_indices = @transform_4, window_bounds = array<i64: 1, 128>}, {pipeline_mode = #tpu.pipeline_mode<synchronous>, transform_indices = @transform_5, window_bounds = array<i64: 128, 4>}, {pipeline_mode = #tpu.pipeline_mode<synchronous>, transform_indices = @transform_6, window_bounds = array<i64: 1, 4>}, {transform_indices = @transform_7, window_bounds = array<i64: 8, 4>}]} {
    %c0 = arith.constant 0 : index
    %c0_0 = arith.constant 0 : index
    %0 = vector.load %arg1[%c0, %c0_0] : memref<8x16xf32, #tpu.memory_space<vmem>>, vector<8x16xf32>
    %c0_1 = arith.constant 0 : index
    %c0_2 = arith.constant 0 : index
    %1 = vector.load %arg2[%c0_1, %c0_2] : memref<16x128xf32, #tpu.memory_space<vmem>>, vector<16x128xf32>
    %c0_3 = arith.constant 0 : index
    %c0_4 = arith.constant 0 : index
    %2 = vector.load %arg3[%c0_3, %c0_4] : memref<1x128xf32, #tpu.memory_space<vmem>>, vector<1x128xf32>
    %cst = arith.constant dense<0.000000e+00> : vector<8x128xf32>
    %3 = tpu.matmul %0, %1, %cst {dimension_numbers = #tpu.dot_dimension_numbers<[1], [0], [0], [1], [0, 0, 1, 1], [], []>} : vector<8x16xf32>, vector<16x128xf32>, vector<8x128xf32> -> vector<8x128xf32>
    %4 = vector.broadcast %2 : vector<1x128xf32> to vector<8x128xf32>
    %5 = arith.addf %3, %4 : vector<8x128xf32>
    %cst_5 = arith.constant 0.000000e+00 : f32
    %6 = vector.broadcast %cst_5 : f32 to vector<8x128xf32>
    %7 = arith.maximumf %5, %6 : vector<8x128xf32>
    %c0_6 = arith.constant 0 : index
    %c0_7 = arith.constant 0 : index
    %8 = vector.load %arg4[%c0_6, %c0_7] : memref<128x128xf32, #tpu.memory_space<vmem>>, vector<128x128xf32>
    %c0_8 = arith.constant 0 : index
    %c0_9 = arith.constant 0 : index
    %9 = vector.load %arg5[%c0_8, %c0_9] : memref<1x128xf32, #tpu.memory_space<vmem>>, vector<1x128xf32>
    %cst_10 = arith.constant dense<0.000000e+00> : vector<8x128xf32>
    %10 = tpu.matmul %7, %8, %cst_10 {dimension_numbers = #tpu.dot_dimension_numbers<[1], [0], [0], [1], [0, 0, 1, 1], [], []>} : vector<8x128xf32>, vector<128x128xf32>, vector<8x128xf32> -> vector<8x128xf32>
    %11 = vector.broadcast %9 : vector<1x128xf32> to vector<8x128xf32>
    %12 = arith.addf %10, %11 : vector<8x128xf32>
    %cst_11 = arith.constant 0.000000e+00 : f32
    %13 = vector.broadcast %cst_11 : f32 to vector<8x128xf32>
    %14 = arith.maximumf %12, %13 : vector<8x128xf32>
    %c0_12 = arith.constant 0 : index
    %c0_13 = arith.constant 0 : index
    %15 = vector.load %arg6[%c0_12, %c0_13] : memref<128x4xf32, #tpu.memory_space<vmem>>, vector<128x4xf32>
    %c0_14 = arith.constant 0 : index
    %c0_15 = arith.constant 0 : index
    %16 = vector.load %arg7[%c0_14, %c0_15] : memref<1x4xf32, #tpu.memory_space<vmem>>, vector<1x4xf32>
    %cst_16 = arith.constant dense<0.000000e+00> : vector<8x4xf32>
    %17 = tpu.matmul %14, %15, %cst_16 {dimension_numbers = #tpu.dot_dimension_numbers<[1], [0], [0], [1], [0, 0, 1, 1], [], []>} : vector<8x128xf32>, vector<128x4xf32>, vector<8x4xf32> -> vector<8x4xf32>
    %18 = vector.broadcast %16 : vector<1x4xf32> to vector<8x4xf32>
    %19 = arith.addf %17, %18 : vector<8x4xf32>
    %c0_17 = arith.constant 0 : index
    %c0_18 = arith.constant 0 : index
    %20 = vector.load %arg8[%c0_17, %c0_18] : memref<8x4xf32, #tpu.memory_space<vmem>>, vector<8x4xf32>
    tpu.vector_store %arg8[%c0_17, %c0_18], %19 {strides = array<i32>} : memref<8x4xf32, #tpu.memory_space<vmem>>, vector<8x4xf32>,
    return
  }
  func.func @transform_0(%arg0: i32) -> (i32, i32) {
    %c0_i32 = arith.constant 0 : i32
    %c0_i32_0 = arith.constant 0 : i32
    return %arg0, %c0_i32 : i32, i32
  }
  func.func @transform_1(%arg0: i32) -> (i32, i32) {
    %c0_i32 = arith.constant 0 : i32
    %c0_i32_0 = arith.constant 0 : i32
    %c0_i32_1 = arith.constant 0 : i32
    return %c0_i32, %c0_i32_0 : i32, i32
  }
  func.func @transform_2(%arg0: i32) -> (i32, i32) {
    %c0_i32 = arith.constant 0 : i32
    %c0_i32_0 = arith.constant 0 : i32
    %c0_i32_1 = arith.constant 0 : i32
    return %c0_i32, %c0_i32_0 : i32, i32
  }
  func.func @transform_3(%arg0: i32) -> (i32, i32) {
    %c0_i32 = arith.constant 0 : i32
    %c0_i32_0 = arith.constant 0 : i32
    %c0_i32_1 = arith.constant 0 : i32
    return %c0_i32, %c0_i32_0 : i32, i32
  }
  func.func @transform_4(%arg0: i32) -> (i32, i32) {
    %c0_i32 = arith.constant 0 : i32
    %c0_i32_0 = arith.constant 0 : i32
    %c0_i32_1 = arith.constant 0 : i32
    return %c0_i32, %c0_i32_0 : i32, i32
  }
  func.func @transform_5(%arg0: i32) -> (i32, i32) {
    %c0_i32 = arith.constant 0 : i32
    %c0_i32_0 = arith.constant 0 : i32
    %c0_i32_1 = arith.constant 0 : i32
    return %c0_i32, %c0_i32_0 : i32, i32
  }
  func.func @transform_6(%arg0: i32) -> (i32, i32) {
    %c0_i32 = arith.constant 0 : i32
    %c0_i32_0 = arith.constant 0 : i32
    %c0_i32_1 = arith.constant 0 : i32
    return %c0_i32, %c0_i32_0 : i32, i32
  }
  func.func @transform_7(%arg0: i32) -> (i32, i32) {
    %c0_i32 = arith.constant 0 : i32
    %c0_i32_0 = arith.constant 0 : i32
    return %arg0, %c0_i32 : i32, i32
  }
}

</mosaic_0001>

<llo_original>
// kernel: tpu_custom_call.1
$region0: #{tpu_custom_call.1}
  #allocation0 [shape = 'u32[]', space=smem, size = 0x4, offset = 0x4, fixed_abs, tag = 'smem constant byte address 0x4 - core index']
  #allocation1 [shape = 'u32[72,128]{1,0:T(1,128)}', space=vmem, size = 0x9000, scoped, tag = 'internal scratch']
  %s0 = inlined_call_operand.hbm [shape: f32[8,16], index: 0, kind: input, shape index: {}]
  %s1 = inlined_call_operand.hbm [shape: f32[16,128], index: 1, kind: input, shape index: {}]
  %s2 = inlined_call_operand.vmem [shape: f32[1,128], index: 2, kind: input, shape index: {}]
  %s3 = inlined_call_operand.vmem [shape: f32[128,128], index: 3, kind: input, shape index: {}]
  %s4 = inlined_call_operand.vmem [shape: f32[1,128], index: 4, kind: input, shape index: {}]
  %s5 = inlined_call_operand.vmem [shape: f32[128,4], index: 5, kind: input, shape index: {}]
  %s6 = inlined_call_operand.vmem [shape: f32[1,4], index: 6, kind: input, shape index: {}]
  %s7 = inlined_call_operand.vmem [shape: f32[8,4], index: 7, kind: output, shape index: {}]
  %s8 = sld [smem:[#allocation0]]
  $region46: #{tpu_custom_call.1} parent=0
    _
  %s10 = ssub.s32 1, %s8
  %s11 = scalar_select 0, %s10, %s8
  $region1: #{tpu_custom_call.1} parent=0
    #allocation2 [shape = 'u8[4096]{0}', space=vmem, size = 0x1000, scoped, tag = 'input window, operand 0, single buffered']
    #allocation3 [shape = 's32[1]{0}', space=sflag, size = 0x4, scoped, tag = 'scoped memory for tpu_custom_call.1']
    #allocation4 [shape = 'u8[8192]{0}', space=vmem, size = 0x2000, scoped, tag = 'input window, operand 1, single buffered']
    #allocation5 [shape = 's32[1]{0}', space=sflag, size = 0x4, scoped, tag = 'scoped memory for tpu_custom_call.1']
    %12 = vsyncpa [#allocation3], 0
    %13 = vsyncpa [#allocation5], 0
    // Predicated region
    $region2: #{tpu_custom_call.1} parent=1 // pred_check
      _
    $region3: #{tpu_custom_call.1} parent=1 // pred_check_branch
      %15 = sbr.rel (0) target = $region5
    $region4: #{tpu_custom_call.1} parent=1 // pred_region
      %17 = vsyncadd [#allocation3], 0
      %s19 = sshll.u32 %s0, 4
      %s20 = int_to_ptr.hbm [resolvable:$true] %s19
      %s21 = sshll.u32 [#allocation2], 4
      %s22 = int_to_ptr.vmem [resolvable:$true] %s21
      %24 = dma.hbm_to_vmem [thread:$0]  %s20, 128, %s22, [#allocation3]
    $region5: #{tpu_custom_call.1} parent=1 // pred_fallthru
      _
    // Predicated region
    $region6: #{tpu_custom_call.1} parent=1 // pred_check
      _
    $region7: #{tpu_custom_call.1} parent=1 // pred_check_branch
      %26 = sbr.rel (0) target = $region9
    $region8: #{tpu_custom_call.1} parent=1 // pred_region
      %28 = vsyncadd [#allocation5], 0
      %s29 = sshll.u32 %s1, 4
      %s30 = int_to_ptr.hbm [resolvable:$true] %s29
      %s31 = sshll.u32 [#allocation4], 4
      %s32 = int_to_ptr.vmem [resolvable:$true] %s31
      %37 = dma.hbm_to_vmem [thread:$0]  %s30, 256, %s32, [#allocation5], 128, 128, 8
    $region9: #{tpu_custom_call.1} parent=1 // pred_fallthru
      _
    // Predicated region
    $region10: #{tpu_custom_call.1} parent=1 // pred_check
      _
    $region11: #{tpu_custom_call.1} parent=1 // pred_check_branch
      %39 = sbr.rel (0) target = $region13
    $region12: #{tpu_custom_call.1} parent=1 // pred_region
      _
    $region13: #{tpu_custom_call.1} parent=1 // pred_fallthru
      _
    // Predicated region
    $region14: #{tpu_custom_call.1} parent=1 // pred_check
      _
    $region15: #{tpu_custom_call.1} parent=1 // pred_check_branch
      %41 = sbr.rel (0) target = $region17
    $region16: #{tpu_custom_call.1} parent=1 // pred_region
      _
    $region17: #{tpu_custom_call.1} parent=1 // pred_fallthru
      _
    // Predicated region
    $region18: #{tpu_custom_call.1} parent=1 // pred_check
      _
    $region19: #{tpu_custom_call.1} parent=1 // pred_check_branch
      %43 = sbr.rel (0) target = $region21
    $region20: #{tpu_custom_call.1} parent=1 // pred_region
      _
    $region21: #{tpu_custom_call.1} parent=1 // pred_fallthru
      _
    // Predicated region
    $region22: #{tpu_custom_call.1} parent=1 // pred_check
      _
    $region23: #{tpu_custom_call.1} parent=1 // pred_check_branch
      %45 = sbr.rel (0) target = $region25
    $region24: #{tpu_custom_call.1} parent=1 // pred_region
      _
    $region25: #{tpu_custom_call.1} parent=1 // pred_fallthru
      _
    // Predicated region
    $region26: #{tpu_custom_call.1} parent=1 // pred_check
      _
    $region27: #{tpu_custom_call.1} parent=1 // pred_check_branch
      %47 = sbr.rel (0) target = $region29
    $region28: #{tpu_custom_call.1} parent=1 // pred_region
      _
    $region29: #{tpu_custom_call.1} parent=1 // pred_fallthru
      _
    // Predicated region
    $region30: #{tpu_custom_call.1} parent=1 // pred_check
      _
    $region31: #{tpu_custom_call.1} parent=1 // pred_check_branch
      %49 = sbr.rel (0) target = $region33
    $region32: #{tpu_custom_call.1} parent=1 // pred_region
      %51 = dma.done [#allocation3], 128
    $region33: #{tpu_custom_call.1} parent=1 // pred_fallthru
      _
    // Predicated region
    $region34: #{tpu_custom_call.1} parent=1 // pred_check
      _
    $region35: #{tpu_custom_call.1} parent=1 // pred_check_branch
      %53 = sbr.rel (0) target = $region37
    $region36: #{tpu_custom_call.1} parent=1 // pred_region
      %55 = dma.done [#allocation5], 256
    $region37: #{tpu_custom_call.1} parent=1 // pred_fallthru
      _
    %v56 = vld [vmem:[#allocation2] sm:$0xff]
    %v57 = vld [vmem:[#allocation4] sm:$0xff]
    %v58 = vld [vmem:[#allocation4 + $0x8] sm:$0xff]
    %v59 = vld [vmem:[%s2] sm:$0x1]
    %v61 = vperm.slane %v59, 0
    %vm63 = vcmask 130048
    %v65 = vsel %vm63, %v56, 0
    %67 = vmatpush.msra.mxu0 0.0
    %68 = vmatpush.msra.mxu0 0.0
    %69 = vmatpush.msra.mxu0 0.0
    %70 = vmatpush.msra.mxu0 0.0
    %71 = vmatpush.msra.mxu0 0.0
    %72 = vmatpush.msra.mxu0 0.0
    %73 = vmatpush.msra.mxu0 0.0
    %74 = vmatpush.msra.mxu0 0.0
    %75 = vmatpush.msra.mxu0 0.0
    %76 = vmatpush.msra.mxu0 0.0
    %77 = vmatpush.msra.mxu0 0.0
    %78 = vmatpush.msra.mxu0 0.0
    %79 = vmatpush.msra.mxu0 0.0
    %80 = vmatpush.msra.mxu0 0.0
    %81 = vmatpush.msra.mxu0 %v58
    %82 = vmatpush.msra.mxu0 %v57
    %83 = vmatmul.f32.gmra.mxu0 %v65
    %v84 = vpop.f32.mrf.mxu0
    %v85 = vadd.f32 %v61, %v84
    %86 = vdwg.mxu0
    %v87 = vmax.f32 %v85, 0.0
    %v88 = vld [vmem:[%s3] sm:$0xff]
    %v89 = vld [vmem:[%s3 + $0x8] sm:$0xff]
    %v90 = vld [vmem:[%s3 + $0x10] sm:$0xff]
    %v91 = vld [vmem:[%s3 + $0x18] sm:$0xff]
    %v92 = vld [vmem:[%s3 + $0x20] sm:$0xff]
    %v93 = vld [vmem:[%s3 + $0x28] sm:$0xff]
    %v94 = vld [vmem:[%s3 + $0x30] sm:$0xff]
    %v95 = vld [vmem:[%s3 + $0x38] sm:$0xff]
    %v96 = vld [vmem:[%s3 + $0x40] sm:$0xff]
    %v97 = vld [vmem:[%s3 + $0x48] sm:$0xff]
    %v98 = vld [vmem:[%s3 + $0x50] sm:$0xff]
    %v99 = vld [vmem:[%s3 + $0x58] sm:$0xff]
    %v100 = vld [vmem:[%s3 + $0x60] sm:$0xff]
    %v101 = vld [vmem:[%s3 + $0x68] sm:$0xff]
    %v102 = vld [vmem:[%s3 + $0x70] sm:$0xff]
    %v103 = vld [vmem:[%s3 + $0x78] sm:$0xff]
    %v104 = vld [vmem:[%s4] sm:$0x1]
    %v106 = vperm.slane %v104, 0
    %108 = vmatpush.msra.mxu0 %v103
    %109 = vmatpush.msra.mxu0 %v102
    %110 = vmatpush.msra.mxu0 %v101
    %111 = vmatpush.msra.mxu0 %v100
    %112 = vmatpush.msra.mxu0 %v99
    %113 = vmatpush.msra.mxu0 %v98
    %114 = vmatpush.msra.mxu0 %v97
    %115 = vmatpush.msra.mxu0 %v96
    %116 = vmatpush.msra.mxu0 %v95
    %117 = vmatpush.msra.mxu0 %v94
    %118 = vmatpush.msra.mxu0 %v93
    %119 = vmatpush.msra.mxu0 %v92
    %120 = vmatpush.msra.mxu0 %v91
    %121 = vmatpush.msra.mxu0 %v90
    %122 = vmatpush.msra.mxu0 %v89
    %123 = vmatpush.msra.mxu0 %v88
    %124 = vmatmul.f32.gmra.mxu0 %v87
    %v125 = vpop.f32.mrf.mxu0
    %v126 = vadd.f32 %v106, %v125
    %127 = vdwg.mxu0
    %v128 = vmax.f32 %v126, 0.0
    %v129 = vld [vmem:[%s5] sm:$0xff]
    %v130 = vld [vmem:[%s5 + $0x8] sm:$0xff]
    %v131 = vld [vmem:[%s5 + $0x10] sm:$0xff]
    %v132 = vld [vmem:[%s5 + $0x18] sm:$0xff]
    %v133 = vld [vmem:[%s5 + $0x20] sm:$0xff]
    %v134 = vld [vmem:[%s5 + $0x28] sm:$0xff]
    %v135 = vld [vmem:[%s5 + $0x30] sm:$0xff]
    %v136 = vld [vmem:[%s5 + $0x38] sm:$0xff]
    %v137 = vld [vmem:[%s5 + $0x40] sm:$0xff]
    %v138 = vld [vmem:[%s5 + $0x48] sm:$0xff]
    %v139 = vld [vmem:[%s5 + $0x50] sm:$0xff]
    %v140 = vld [vmem:[%s5 + $0x58] sm:$0xff]
    %v141 = vld [vmem:[%s5 + $0x60] sm:$0xff]
    %v142 = vld [vmem:[%s5 + $0x68] sm:$0xff]
    %v143 = vld [vmem:[%s5 + $0x70] sm:$0xff]
    %v144 = vld [vmem:[%s5 + $0x78] sm:$0xff]
    %v145 = vld [vmem:[%s6] sm:$0x1]
    %v147 = vperm.slane %v145, 0
    %149 = vmatpush.msra.mxu0 %v144
    %150 = vmatpush.msra.mxu0 %v143
    %151 = vmatpush.msra.mxu0 %v142
    %152 = vmatpush.msra.mxu0 %v141
    %153 = vmatpush.msra.mxu0 %v140
    %154 = vmatpush.msra.mxu0 %v139
    %155 = vmatpush.msra.mxu0 %v138
    %156 = vmatpush.msra.mxu0 %v137
    %157 = vmatpush.msra.mxu0 %v136
    %158 = vmatpush.msra.mxu0 %v135
    %159 = vmatpush.msra.mxu0 %v134
    %160 = vmatpush.msra.mxu0 %v133
    %161 = vmatpush.msra.mxu0 %v132
    %162 = vmatpush.msra.mxu0 %v131
    %163 = vmatpush.msra.mxu0 %v130
    %164 = vmatpush.msra.mxu0 %v129
    %165 = vmatmul.f32.gmra.mxu0 %v128
    %v166 = vpop.f32.mrf.mxu0
    %v167 = vadd.f32 %v147, %v166
    %168 = vdwg.mxu0
    %vm169 = vcmask 31744
    %170 = vst.msk [vmem:[%s7] sm:$0xff] %vm169, %v167
    // Predicated region
    $region38: #{tpu_custom_call.1} parent=1 // pred_check
      _
    $region39: #{tpu_custom_call.1} parent=1 // pred_check_branch
      %172 = sbr.rel (0) target = $region41
    $region40: #{tpu_custom_call.1} parent=1 // pred_region
      _
    $region41: #{tpu_custom_call.1} parent=1 // pred_fallthru
      _
    // Predicated region
    $region42: #{tpu_custom_call.1} parent=1 // pred_check
      _
    $region43: #{tpu_custom_call.1} parent=1 // pred_check_branch
      %174 = sbr.rel (0) target = $region45
    $region44: #{tpu_custom_call.1} parent=1 // pred_region
      _
    $region45: #{tpu_custom_call.1} parent=1 // pred_fallthru
      _
    %175 = vsyncpa [#allocation3], 1
    %176 = vsyncpa [#allocation5], 1

</llo_original>
